<compile_context>
chip_gen: v6e
topology: v6e:2x2x1
jax: 0.10.0
libtpu: 0.0.40
codegen_flags: <defaults>
</compile_context>

<pallas_src>
import math

import jax
import jax.numpy as jnp
from jax.experimental import pallas as pl
from jax.experimental.pallas import tpu as pltpu

LANE = 128
SUBLANE = 8
MAX_BATCH_TILE = 512  # sweepable; multiple of 8


def _round_up(n, m):
    return ((n + m - 1) // m) * m


def _pad2(a, rows, cols):
    return jnp.pad(a, ((0, rows - a.shape[0]), (0, cols - a.shape[1])))


# ----------------------------------------------------------------------------
# Kernel
# ----------------------------------------------------------------------------
def actor_kernel(x_ref, w1_ref, b1_ref, w2_ref, b2_ref, w3_ref, b3_ref, o_ref):
    x = x_ref[...]  # bf16 (bt, S)

    # fc1 + relu (dropout1: identity, eval mode).  bf16 x bf16 -> f32 acc.
    h1 = jnp.dot(x, w1_ref[...], preferred_element_type=jnp.float32) + b1_ref[...]
    h1 = jnp.maximum(h1, 0.0)

    # fc2 + relu (dropout2: identity, eval mode).
    h2 = jnp.dot(h1.astype(jnp.bfloat16), w2_ref[...],
                 preferred_element_type=jnp.float32) + b2_ref[...]
    h2 = jnp.maximum(h2, 0.0)

    # fc3.  Padded (fake) action columns of w3 are zero and b3 holds -1e30
    # there, so those logits underflow to exp(..) == 0 in the softmax below.
    logits = jnp.dot(h2.astype(jnp.bfloat16), w3_ref[...],
                     preferred_element_type=jnp.float32) + b3_ref[...]

    # Numerically stable softmax over last dim; reciprocal on the EUP slot.
    m = jnp.max(logits, axis=-1, keepdims=True)
    e = jnp.exp(logits - m)
    denom = jnp.sum(e, axis=-1, keepdims=True)
    o_ref[...] = (e * pl.reciprocal(denom, approx=True)).astype(o_ref.dtype)


# ----------------------------------------------------------------------------
# Parameter preparation (done ONCE, not per forward call)
# ----------------------------------------------------------------------------
def prepare_params(params):
    """Pad + cast static parameters once.

    Weights -> bf16, padded to MXU-friendly shapes.
    Biases  -> f32; b3's padded action lanes carry -1e30 (softmax mask baked in).
    """
    w1, b1, w2, b2, w3, b3 = params
    state_dim, units = w1.shape
    n_actions = w3.shape[1]

    S = _round_up(state_dim, SUBLANE)   # contraction dim only needs sublane align
    U = _round_up(units, LANE)          # hidden width: full lane tile
    A = _round_up(n_actions, SUBLANE)   # narrow output block (f32-exact, few bytes)

    w1p = _pad2(w1, S, U).astype(jnp.bfloat16)
    b1p = _pad2(b1, 1, U).astype(jnp.float32)
    w2p = _pad2(w2, U, U).astype(jnp.bfloat16)
    b2p = _pad2(b2, 1, U).astype(jnp.float32)
    w3p = _pad2(w3, U, A).astype(jnp.bfloat16)
    # Keep the -1e30 mask in an f32 bias so padded lanes still hit exp -> 0.
    b3p = jnp.pad(b3.astype(jnp.float32),
                  ((0, 0), (0, A - n_actions)), constant_values=-1e30)

    meta = dict(state_dim=state_dim, n_actions=n_actions, S=S, U=U, A=A)
    return (w1p, b1p, w2p, b2p, w3p, b3p), meta


# ----------------------------------------------------------------------------
# Forward wrapper
# ----------------------------------------------------------------------------
def actor_forward(x, prepared, meta, *, batch_tile=None):
    w1p, b1p, w2p, b2p, w3p, b3p = prepared
    S, U, A = meta["S"], meta["U"], meta["A"]
    n_actions = meta["n_actions"]

    batch, state_dim = x.shape

    # Batch tiling: small batches -> single sublane-aligned tile; rollout-scale
    # batches -> 512-row tiles streamed through the grid (>=2 grid steps on
    # large batches so v7x can shard the "parallel" axis across both TCs).
    if batch_tile is None:
        batch_tile = min(_round_up(batch, SUBLANE), MAX_BATCH_TILE)
    B = _round_up(batch, batch_tile)

    # Stream x at its natural (sublane-aligned) width, bf16.
    xp = jnp.pad(x, ((0, B - batch), (0, S - state_dim))).astype(jnp.bfloat16)

    grid = (B // batch_tile,)

    # Advisory cost estimate so XLA can schedule around the call.
    flops = 2 * B * (S * U + U * U + U * A)
    bytes_accessed = (2 * (B * S + S * U + U * U + U * A)   # bf16 x + weights
                      + 4 * (B * A + 2 * U + A))            # f32 out + biases
    transcendentals = B * A  # exp in softmax

    out = pl.pallas_call(
        actor_kernel,
        out_shape=jax.ShapeDtypeStruct((B, A), jnp.float32),
        grid=grid,
        in_specs=[
            pl.BlockSpec((batch_tile, S), lambda i: (i, 0)),  # x: streamed
            pl.BlockSpec((S, U), lambda i: (0, 0)),           # w1: resident
            pl.BlockSpec((1, U), lambda i: (0, 0)),           # b1: resident
            pl.BlockSpec((U, U), lambda i: (0, 0)),           # w2: resident
            pl.BlockSpec((1, U), lambda i: (0, 0)),           # b2: resident
            pl.BlockSpec((U, A), lambda i: (0, 0)),           # w3: resident
            pl.BlockSpec((1, A), lambda i: (0, 0)),           # b3: resident (f32, masked)
        ],
        out_specs=pl.BlockSpec((batch_tile, A), lambda i: (i, 0)),
        compiler_params=pltpu.CompilerParams(
            dimension_semantics=("parallel",)),
        cost_estimate=pl.CostEstimate(
            flops=flops,
            transcendentals=transcendentals,
            bytes_accessed=bytes_accessed),
    )(xp, w1p, b1p, w2p, b2p, w3p, b3p)

    # Slice away batch / action padding (cheap XLA slice).
    return out[:batch, :n_actions]


# ----------------------------------------------------------------------------
# Init + reference
# ----------------------------------------------------------------------------
def init_linear(key, in_dim, out_dim):
    """PyTorch nn.Linear default init: U(-1/sqrt(in), 1/sqrt(in)).
    Weight returned pre-transposed as (in_dim, out_dim)."""
    kw, kb = jax.random.split(key)
    bound = 1.0 / math.sqrt(in_dim)
    w = jax.random.uniform(kw, (in_dim, out_dim), jnp.float32, -bound, bound)
    b = jax.random.uniform(kb, (1, out_dim), jnp.float32, -bound, bound)
    return w, b


def make_params(key, state_dim, n_actions, units):
    k1, k2, k3 = jax.random.split(key, 3)
    w1, b1 = init_linear(k1, state_dim, units)
    w2, b2 = init_linear(k2, units, units)
    w3, b3 = init_linear(k3, units, n_actions)
    return (w1, b1, w2, b2, w3, b3)


def actor_reference(x, params):
    """Pure-JAX f32 reference (eval-mode dropout = identity)."""
    w1, b1, w2, b2, w3, b3 = params
    h1 = jnp.maximum(x @ w1 + b1, 0.0)
    h2 = jnp.maximum(h1 @ w2 + b2, 0.0)
    logits = h2 @ w3 + b3
    return jax.nn.softmax(logits, axis=-1)


if __name__ == "__main__":
    state_dim, n_actions, units, batch = 16, 6, 32, 8

    key = jax.random.PRNGKey(0)
    kx, kp = jax.random.split(key)

    x = jax.random.normal(kx, (batch, state_dim), jnp.float32)
    params = make_params(kp, state_dim, n_actions, units)

    prepared, meta = prepare_params(params)   # one-time pad + cast

    out = jax.block_until_ready(actor_forward(x, prepared, meta))
    ref = actor_reference(x, params)

    assert out.shape == (batch, n_actions)
    # bf16 MXU matmuls (~3 decimal digits) + approx-reciprocal softmax denom:
    # probabilities are bounded by 1, so a 1e-2 abs/rel tolerance is ample.
    assert jnp.allclose(out, ref, atol=1e-2, rtol=1e-2), "mismatch vs reference"
    assert jnp.allclose(jnp.sum(out, axis=-1), 1.0, atol=5e-3)

    print("KERNEL_OK")
</pallas_src>

<mosaic_0001>
module attributes {stable_mosaic.version = 11 : i64} {
  func.func @actor_kernel(%arg0: i32, %arg1: memref<8x16xbf16, #tpu.memory_space<vmem>>, %arg2: memref<16x128xbf16, #tpu.memory_space<vmem>>, %arg3: memref<1x128xf32, #tpu.memory_space<vmem>>, %arg4: memref<128x128xbf16, #tpu.memory_space<vmem>>, %arg5: memref<1x128xf32, #tpu.memory_space<vmem>>, %arg6: memref<128x8xbf16, #tpu.memory_space<vmem>>, %arg7: memref<1x8xf32, #tpu.memory_space<vmem>>, %arg8: memref<8x8xf32, #tpu.memory_space<vmem>>) attributes {dimension_semantics = [#tpu.dimension_semantics<parallel>], iteration_bounds = array<i64: 1>, scalar_prefetch = 0 : i64, scratch_operands = 0 : i64, tpu.core_type = #tpu.core_type<tc>, window_params = [{transform_indices = @transform_0, window_bounds = array<i64: 8, 16>}, {pipeline_mode = #tpu.pipeline_mode<synchronous>, transform_indices = @transform_1, window_bounds = array<i64: 16, 128>}, {pipeline_mode = #tpu.pipeline_mode<synchronous>, transform_indices = @transform_2, window_bounds = array<i64: 1, 128>}, {pipeline_mode = #tpu.pipeline_mode<synchronous>, transform_indices = @transform_3, window_bounds = array<i64: 128, 128>}, {pipeline_mode = #tpu.pipeline_mode<synchronous>, transform_indices = @transform_4, window_bounds = array<i64: 1, 128>}, {pipeline_mode = #tpu.pipeline_mode<synchronous>, transform_indices = @transform_5, window_bounds = array<i64: 128, 8>}, {pipeline_mode = #tpu.pipeline_mode<synchronous>, transform_indices = @transform_6, window_bounds = array<i64: 1, 8>}, {transform_indices = @transform_7, window_bounds = array<i64: 8, 8>}]} {
    %c0 = arith.constant 0 : index
    %c0_0 = arith.constant 0 : index
    %0 = vector.load %arg1[%c0, %c0_0] : memref<8x16xbf16, #tpu.memory_space<vmem>>, vector<8x16xbf16>
    %c0_1 = arith.constant 0 : index
    %c0_2 = arith.constant 0 : index
    %1 = vector.load %arg2[%c0_1, %c0_2] : memref<16x128xbf16, #tpu.memory_space<vmem>>, vector<16x128xbf16>
    %cst = arith.constant dense<0.000000e+00> : vector<8x128xf32>
    %2 = tpu.matmul %0, %1, %cst {dimension_numbers = #tpu.dot_dimension_numbers<[1], [0], [0], [1], [0, 0, 1, 1], [], []>} : vector<8x16xbf16>, vector<16x128xbf16>, vector<8x128xf32> -> vector<8x128xf32>
    %c0_3 = arith.constant 0 : index
    %c0_4 = arith.constant 0 : index
    %3 = vector.load %arg3[%c0_3, %c0_4] : memref<1x128xf32, #tpu.memory_space<vmem>>, vector<1x128xf32>
    %4 = vector.broadcast %3 : vector<1x128xf32> to vector<8x128xf32>
    %5 = arith.addf %2, %4 : vector<8x128xf32>
    %cst_5 = arith.constant 0.000000e+00 : f32
    %6 = vector.broadcast %cst_5 : f32 to vector<8x128xf32>
    %7 = arith.maximumf %5, %6 : vector<8x128xf32>
    %8 = arith.truncf %7 : vector<8x128xf32> to vector<8x128xbf16>
    %c0_6 = arith.constant 0 : index
    %c0_7 = arith.constant 0 : index
    %9 = vector.load %arg4[%c0_6, %c0_7] : memref<128x128xbf16, #tpu.memory_space<vmem>>, vector<128x128xbf16>
    %cst_8 = arith.constant dense<0.000000e+00> : vector<8x128xf32>
    %10 = tpu.matmul %8, %9, %cst_8 {dimension_numbers = #tpu.dot_dimension_numbers<[1], [0], [0], [1], [0, 0, 1, 1], [], []>} : vector<8x128xbf16>, vector<128x128xbf16>, vector<8x128xf32> -> vector<8x128xf32>
    %c0_9 = arith.constant 0 : index
    %c0_10 = arith.constant 0 : index
    %11 = vector.load %arg5[%c0_9, %c0_10] : memref<1x128xf32, #tpu.memory_space<vmem>>, vector<1x128xf32>
    %12 = vector.broadcast %11 : vector<1x128xf32> to vector<8x128xf32>
    %13 = arith.addf %10, %12 : vector<8x128xf32>
    %cst_11 = arith.constant 0.000000e+00 : f32
    %14 = vector.broadcast %cst_11 : f32 to vector<8x128xf32>
    %15 = arith.maximumf %13, %14 : vector<8x128xf32>
    %16 = arith.truncf %15 : vector<8x128xf32> to vector<8x128xbf16>
    %c0_12 = arith.constant 0 : index
    %c0_13 = arith.constant 0 : index
    %17 = vector.load %arg6[%c0_12, %c0_13] : memref<128x8xbf16, #tpu.memory_space<vmem>>, vector<128x8xbf16>
    %cst_14 = arith.constant dense<0.000000e+00> : vector<8x8xf32>
    %18 = tpu.matmul %16, %17, %cst_14 {dimension_numbers = #tpu.dot_dimension_numbers<[1], [0], [0], [1], [0, 0, 1, 1], [], []>} : vector<8x128xbf16>, vector<128x8xbf16>, vector<8x8xf32> -> vector<8x8xf32>
    %c0_15 = arith.constant 0 : index
    %c0_16 = arith.constant 0 : index
    %19 = vector.load %arg7[%c0_15, %c0_16] : memref<1x8xf32, #tpu.memory_space<vmem>>, vector<1x8xf32>
    %20 = vector.broadcast %19 : vector<1x8xf32> to vector<8x8xf32>
    %21 = arith.addf %18, %20 : vector<8x8xf32>
    %cst_17 = arith.constant dense<0xFF800000> : vector<8xf32>
    %22 = vector.multi_reduction <maximumf>, %21, %cst_17 [1] : vector<8x8xf32> to vector<8xf32>
    %23 = vector.shape_cast %22 : vector<8xf32> to vector<8x1xf32>
    %24 = vector.broadcast %23 : vector<8x1xf32> to vector<8x8xf32>
    %25 = arith.subf %21, %24 : vector<8x8xf32>
    %26 = math.exp %25 : vector<8x8xf32>
    %cst_18 = arith.constant dense<0.000000e+00> : vector<8xf32>
    %27 = vector.multi_reduction <add>, %26, %cst_18 [1] : vector<8x8xf32> to vector<8xf32>
    %28 = vector.shape_cast %27 : vector<8xf32> to vector<8x1xf32>
    %29 = tpu.reciprocal %28 {approx = true} : vector<8x1xf32> -> vector<8x1xf32>
    %30 = vector.broadcast %29 : vector<8x1xf32> to vector<8x8xf32>
    %31 = arith.mulf %26, %30 : vector<8x8xf32>
    %c0_19 = arith.constant 0 : index
    %c0_20 = arith.constant 0 : index
    %32 = vector.load %arg8[%c0_19, %c0_20] : memref<8x8xf32, #tpu.memory_space<vmem>>, vector<8x8xf32>
    tpu.vector_store %arg8[%c0_19, %c0_20], %31 {strides = array<i32>} : memref<8x8xf32, #tpu.memory_space<vmem>>, vector<8x8xf32>,
    return
  }
  func.func @transform_0(%arg0: i32) -> (i32, i32) {
    %c0_i32 = arith.constant 0 : i32
    %c0_i32_0 = arith.constant 0 : i32
    return %arg0, %c0_i32 : i32, i32
  }
  func.func @transform_1(%arg0: i32) -> (i32, i32) {
    %c0_i32 = arith.constant 0 : i32
    %c0_i32_0 = arith.constant 0 : i32
    %c0_i32_1 = arith.constant 0 : i32
    return %c0_i32, %c0_i32_0 : i32, i32
  }
  func.func @transform_2(%arg0: i32) -> (i32, i32) {
    %c0_i32 = arith.constant 0 : i32
    %c0_i32_0 = arith.constant 0 : i32
    %c0_i32_1 = arith.constant 0 : i32
    return %c0_i32, %c0_i32_0 : i32, i32
  }
  func.func @transform_3(%arg0: i32) -> (i32, i32) {
    %c0_i32 = arith.constant 0 : i32
    %c0_i32_0 = arith.constant 0 : i32
    %c0_i32_1 = arith.constant 0 : i32
    return %c0_i32, %c0_i32_0 : i32, i32
  }
  func.func @transform_4(%arg0: i32) -> (i32, i32) {
    %c0_i32 = arith.constant 0 : i32
    %c0_i32_0 = arith.constant 0 : i32
    %c0_i32_1 = arith.constant 0 : i32
    return %c0_i32, %c0_i32_0 : i32, i32
  }
  func.func @transform_5(%arg0: i32) -> (i32, i32) {
    %c0_i32 = arith.constant 0 : i32
    %c0_i32_0 = arith.constant 0 : i32
    %c0_i32_1 = arith.constant 0 : i32
    return %c0_i32, %c0_i32_0 : i32, i32
  }
  func.func @transform_6(%arg0: i32) -> (i32, i32) {
    %c0_i32 = arith.constant 0 : i32
    %c0_i32_0 = arith.constant 0 : i32
    %c0_i32_1 = arith.constant 0 : i32
    return %c0_i32, %c0_i32_0 : i32, i32
  }
  func.func @transform_7(%arg0: i32) -> (i32, i32) {
    %c0_i32 = arith.constant 0 : i32
    %c0_i32_0 = arith.constant 0 : i32
    return %arg0, %c0_i32 : i32, i32
  }
}

</mosaic_0001>

<llo_original>
// kernel: tpu_custom_call.1
$region0: #{tpu_custom_call.1}
  #allocation0 [shape = 'u32[]', space=smem, size = 0x4, offset = 0x4, fixed_abs, tag = 'smem constant byte address 0x4 - core index']
  #allocation1 [shape = 'u32[144,128]{1,0:T(1,128)}', space=vmem, size = 0x12000, scoped, tag = 'internal scratch']
  %s0 = inlined_call_operand.hbm [shape: bf16[8,16], index: 0, kind: input, shape index: {}]
  %s1 = inlined_call_operand.vmem [shape: bf16[16,128], index: 1, kind: input, shape index: {}]
  %s2 = inlined_call_operand.vmem [shape: f32[1,128], index: 2, kind: input, shape index: {}]
  %s3 = inlined_call_operand.vmem [shape: bf16[128,128], index: 3, kind: input, shape index: {}]
  %s4 = inlined_call_operand.hbm [shape: f32[1,128], index: 4, kind: input, shape index: {}]
  %s5 = inlined_call_operand.vmem [shape: bf16[128,8], index: 5, kind: input, shape index: {}]
  %s6 = inlined_call_operand.vmem [shape: f32[1,8], index: 6, kind: input, shape index: {}]
  %s7 = inlined_call_operand.hbm [shape: f32[8,8], index: 7, kind: output, shape index: {}]
  %s8 = sld [smem:[#allocation0]]
  $region46: #{tpu_custom_call.1} parent=0
    _
  %s10 = ssub.s32 1, %s8
  %s11 = scalar_select 0, %s10, %s8
  $region1: #{tpu_custom_call.1} parent=0
    #allocation2 [shape = 'u8[2048]{0}', space=vmem, size = 0x800, scoped, tag = 'input window, operand 0, single buffered']
    #allocation3 [shape = 's32[1]{0}', space=sflag, size = 0x4, scoped, tag = 'scoped memory for tpu_custom_call.1']
    #allocation4 [shape = 's32[1]{0}', space=sflag, size = 0x4, scoped, tag = 'scoped memory for tpu_custom_call.1']
    #allocation5 [shape = 'u8[512]{0}', space=vmem, size = 0x400, scoped, tag = 'input window, operand 4, single buffered']
    #allocation6 [shape = 's32[1]{0}', space=sflag, size = 0x4, scoped, tag = 'scoped memory for tpu_custom_call.1']
    #allocation7 [shape = 'u8[4096]{0}', space=vmem, size = 0x1000, scoped, tag = 'output window, operand 0, single buffered']
    %12 = vsyncpa [#allocation3], 0
    %13 = vsyncpa [#allocation6], 0
    %14 = vsyncpa [#allocation4], 0
    // Predicated region
    $region2: #{tpu_custom_call.1} parent=1 // pred_check
      _
    $region3: #{tpu_custom_call.1} parent=1 // pred_check_branch
      %16 = sbr.rel (0) target = $region5
    $region4: #{tpu_custom_call.1} parent=1 // pred_region
      %s18 = ssub.s32 64, 64
      %19 = vsyncadd [#allocation3], %s18
      %s21 = sshll.u32 [#allocation2], 4
      %s22 = int_to_ptr.vmem [resolvable:$true] %s21
      %24 = dma.hbm_to_vmem [thread:$0]  %s0, 64, %s22, [#allocation3]
    $region5: #{tpu_custom_call.1} parent=1 // pred_fallthru
      _
    // Predicated region
    $region6: #{tpu_custom_call.1} parent=1 // pred_check
      _
    $region7: #{tpu_custom_call.1} parent=1 // pred_check_branch
      %26 = sbr.rel (0) target = $region9
    $region8: #{tpu_custom_call.1} parent=1 // pred_region
      _
    $region9: #{tpu_custom_call.1} parent=1 // pred_fallthru
      _
    // Predicated region
    $region10: #{tpu_custom_call.1} parent=1 // pred_check
      _
    $region11: #{tpu_custom_call.1} parent=1 // pred_check_branch
      %28 = sbr.rel (0) target = $region13
    $region12: #{tpu_custom_call.1} parent=1 // pred_region
      _
    $region13: #{tpu_custom_call.1} parent=1 // pred_fallthru
      _
    // Predicated region
    $region14: #{tpu_custom_call.1} parent=1 // pred_check
      _
    $region15: #{tpu_custom_call.1} parent=1 // pred_check_branch
      %30 = sbr.rel (0) target = $region17
    $region16: #{tpu_custom_call.1} parent=1 // pred_region
      _
    $region17: #{tpu_custom_call.1} parent=1 // pred_fallthru
      _
    // Predicated region
    $region18: #{tpu_custom_call.1} parent=1 // pred_check
      _
    $region19: #{tpu_custom_call.1} parent=1 // pred_check_branch
      %32 = sbr.rel (0) target = $region21
    $region20: #{tpu_custom_call.1} parent=1 // pred_region
      %s34 = ssub.s32 16, 16
      %35 = vsyncadd [#allocation6], %s34
      %s37 = sshll.u32 [#allocation5], 4
      %s38 = int_to_ptr.vmem [resolvable:$true] %s37
      %40 = dma.hbm_to_vmem [thread:$0]  %s4, 16, %s38, [#allocation6]
    $region21: #{tpu_custom_call.1} parent=1 // pred_fallthru
      _
    // Predicated region
    $region22: #{tpu_custom_call.1} parent=1 // pred_check
      _
    $region23: #{tpu_custom_call.1} parent=1 // pred_check_branch
      %42 = sbr.rel (0) target = $region25
    $region24: #{tpu_custom_call.1} parent=1 // pred_region
      _
    $region25: #{tpu_custom_call.1} parent=1 // pred_fallthru
      _
    // Predicated region
    $region26: #{tpu_custom_call.1} parent=1 // pred_check
      _
    $region27: #{tpu_custom_call.1} parent=1 // pred_check_branch
      %44 = sbr.rel (0) target = $region29
    $region28: #{tpu_custom_call.1} parent=1 // pred_region
      _
    $region29: #{tpu_custom_call.1} parent=1 // pred_fallthru
      _
    // Predicated region
    $region30: #{tpu_custom_call.1} parent=1 // pred_check
      _
    $region31: #{tpu_custom_call.1} parent=1 // pred_check_branch
      %46 = sbr.rel (0) target = $region33
    $region32: #{tpu_custom_call.1} parent=1 // pred_region
      %47 = dma.done [#allocation3], 64
    $region33: #{tpu_custom_call.1} parent=1 // pred_fallthru
      _
    // Predicated region
    $region34: #{tpu_custom_call.1} parent=1 // pred_check
      _
    $region35: #{tpu_custom_call.1} parent=1 // pred_check_branch
      %49 = sbr.rel (0) target = $region37
    $region36: #{tpu_custom_call.1} parent=1 // pred_region
      %50 = dma.done [#allocation6], 16
    $region37: #{tpu_custom_call.1} parent=1 // pred_fallthru
      _
    %v52 = vld [vmem:[#allocation2] sm:$0xf]
    %v53 = vld [vmem:[%s1] sm:$0xf]
    %v54 = vld [vmem:[%s1 + $0x4] sm:$0xf]
    %v55 = vld [vmem:[%s2] sm:$0x1]
    %v57 = vlaneseq
    %v58 = vshrl.u32 %v57, 7
    %v59 = vsub.s32 0, %v58
    %v60 = vrot.slane %v55, %v59
    %v64 = vunpack.c.l.b16 %v53
    %v65 = vunpack.c.l.b16 %v54
    %v66 = vpack.c.b16 %v65, %v64
    %vm68 = vcmask 130048
    %v70 = vsel %vm68, %v52, 0
    %72 = vmatprep.subr.bf16.mxu0 0
    %73 = vmatpush1.bf16.msra.mxu0 0
    %74 = vmatprep.subr.bf16.mxu0 0
    %75 = vmatpush1.bf16.msra.mxu0 0
    %76 = vmatprep.subr.bf16.mxu0 0
    %77 = vmatpush1.bf16.msra.mxu0 0
    %78 = vmatprep.subr.bf16.mxu0 0
    %79 = vmatpush1.bf16.msra.mxu0 0
    %80 = vmatprep.subr.bf16.mxu0 0
    %81 = vmatpush1.bf16.msra.mxu0 0
    %82 = vmatprep.subr.bf16.mxu0 0
    %83 = vmatpush1.bf16.msra.mxu0 0
    %84 = vmatprep.subr.bf16.mxu0 0
    %85 = vmatpush1.bf16.msra.mxu0 0
    %86 = vmatprep.subr.bf16.mxu0 0
    %87 = vmatpush1.bf16.msra.mxu0 %v66
    %88 = vmatprep.subr.bf16.mxu0 0
    %89 = vmatpush2.bf16.msra.mxu0 0
    %90 = vmatprep.subr.bf16.mxu0 0
    %91 = vmatpush2.bf16.msra.mxu0 0
    %92 = vmatprep.subr.bf16.mxu0 0
    %93 = vmatpush2.bf16.msra.mxu0 0
    %94 = vmatprep.subr.bf16.mxu0 0
    %95 = vmatpush2.bf16.msra.mxu0 0
    %96 = vmatprep.subr.bf16.mxu0 0
    %97 = vmatpush2.bf16.msra.mxu0 0
    %98 = vmatprep.subr.bf16.mxu0 0
    %99 = vmatpush2.bf16.msra.mxu0 0
    %100 = vmatprep.subr.bf16.mxu0 0
    %101 = vmatpush2.bf16.msra.mxu0 0
    %102 = vmatprep.subr.bf16.mxu0 0
    %103 = vmatpush2.bf16.msra.mxu0 0
    %104 = vmatprep.mubr.bf16.mxu0 0
    %105 = vmatmul.mubr.bf16.gmra.mxu0 %v70
    %v106 = vpop.f32.mrf.mxu0
    %v107 = vadd.f32 %v60, %v106
    %v108 = vpop.f32.mrf.mxu0
    %v109 = vpop.f32.mrf.mxu0
    %v110 = vpop.f32.mrf.mxu0
    %111 = vdwg.mxu0
    %v112 = vmax.f32 %v107, 0.0
    %v113 = vpack.c.bf16 %v112, %v112
    %v114 = vld [vmem:[%s3] sm:$0xf]
    %v115 = vld [vmem:[%s3 + $0x4] sm:$0xf]
    %v116 = vld [vmem:[%s3 + $0x8] sm:$0xf]
    %v117 = vld [vmem:[%s3 + $0xc] sm:$0xf]
    %v118 = vld [vmem:[%s3 + $0x10] sm:$0xf]
    %v119 = vld [vmem:[%s3 + $0x14] sm:$0xf]
    %v120 = vld [vmem:[%s3 + $0x18] sm:$0xf]
    %v121 = vld [vmem:[%s3 + $0x1c] sm:$0xf]
    %v122 = vld [vmem:[%s3 + $0x20] sm:$0xf]
    %v123 = vld [vmem:[%s3 + $0x24] sm:$0xf]
    %v124 = vld [vmem:[%s3 + $0x28] sm:$0xf]
    %v125 = vld [vmem:[%s3 + $0x2c] sm:$0xf]
    %v126 = vld [vmem:[%s3 + $0x30] sm:$0xf]
    %v127 = vld [vmem:[%s3 + $0x34] sm:$0xf]
    %v128 = vld [vmem:[%s3 + $0x38] sm:$0xf]
    %v129 = vld [vmem:[%s3 + $0x3c] sm:$0xf]
    %v130 = vld [vmem:[#allocation5] sm:$0x1]
    %v132 = vlaneseq
    %v133 = vshrl.u32 %v132, 7
    %v134 = vsub.s32 0, %v133
    %v135 = vrot.slane %v130, %v134
    %v153 = vunpack.c.l.b16 %v114
    %v154 = vunpack.c.l.b16 %v115
    %v155 = vunpack.c.l.b16 %v116
    %v156 = vunpack.c.l.b16 %v117
    %v157 = vunpack.c.l.b16 %v118
    %v158 = vunpack.c.l.b16 %v119
    %v159 = vunpack.c.l.b16 %v120
    %v160 = vunpack.c.l.b16 %v121
    %v161 = vunpack.c.l.b16 %v122
    %v162 = vunpack.c.l.b16 %v123
    %v163 = vunpack.c.l.b16 %v124
    %v164 = vunpack.c.l.b16 %v125
    %v165 = vunpack.c.l.b16 %v126
    %v166 = vunpack.c.l.b16 %v127
    %v167 = vunpack.c.l.b16 %v128
    %v168 = vunpack.c.l.b16 %v129
    %v169 = vpack.c.b16 %v154, %v153
    %v170 = vpack.c.b16 %v156, %v155
    %v171 = vpack.c.b16 %v158, %v157
    %v172 = vpack.c.b16 %v160, %v159
    %v173 = vpack.c.b16 %v162, %v161
    %v174 = vpack.c.b16 %v164, %v163
    %v175 = vpack.c.b16 %v166, %v165
    %v176 = vpack.c.b16 %v168, %v167
    %185 = vmatprep.subr.bf16.mxu0 0
    %186 = vmatpush1.bf16.msra.mxu0 %v176
    %187 = vmatprep.subr.bf16.mxu0 0
    %188 = vmatpush1.bf16.msra.mxu0 %v175
    %189 = vmatprep.subr.bf16.mxu0 0
    %190 = vmatpush1.bf16.msra.mxu0 %v174
    %191 = vmatprep.subr.bf16.mxu0 0
    %192 = vmatpush1.bf16.msra.mxu0 %v173
    %193 = vmatprep.subr.bf16.mxu0 0
    %194 = vmatpush1.bf16.msra.mxu0 %v172
    %195 = vmatprep.subr.bf16.mxu0 0
    %196 = vmatpush1.bf16.msra.mxu0 %v171
    %197 = vmatprep.subr.bf16.mxu0 0
    %198 = vmatpush1.bf16.msra.mxu0 %v170
    %199 = vmatprep.subr.bf16.mxu0 0
    %200 = vmatpush1.bf16.msra.mxu0 %v169
    %201 = vmatprep.subr.bf16.mxu0 0
    %202 = vmatpush2.bf16.msra.mxu0 0
    %203 = vmatprep.subr.bf16.mxu0 0
    %204 = vmatpush2.bf16.msra.mxu0 0
    %205 = vmatprep.subr.bf16.mxu0 0
    %206 = vmatpush2.bf16.msra.mxu0 0
    %207 = vmatprep.subr.bf16.mxu0 0
    %208 = vmatpush2.bf16.msra.mxu0 0
    %209 = vmatprep.subr.bf16.mxu0 0
    %210 = vmatpush2.bf16.msra.mxu0 0
    %211 = vmatprep.subr.bf16.mxu0 0
    %212 = vmatpush2.bf16.msra.mxu0 0
    %213 = vmatprep.subr.bf16.mxu0 0
    %214 = vmatpush2.bf16.msra.mxu0 0
    %215 = vmatprep.subr.bf16.mxu0 0
    %216 = vmatpush2.bf16.msra.mxu0 0
    %217 = vmatprep.mubr.bf16.mxu0 0
    %218 = vmatmul.mubr.bf16.gmra.mxu0 %v113
    %v219 = vpop.f32.mrf.mxu0
    %v220 = vadd.f32 %v135, %v219
    %v221 = vpop.f32.mrf.mxu0
    %v222 = vpop.f32.mrf.mxu0
    %v223 = vpop.f32.mrf.mxu0
    %224 = vdwg.mxu0
    %v225 = vmax.f32 %v220, 0.0
    %v226 = vpack.c.bf16 %v225, %v225
    %v227 = vld [vmem:[%s5] sm:$0xf]
    %v228 = vld [vmem:[%s5 + $0x4] sm:$0xf]
    %v229 = vld [vmem:[%s5 + $0x8] sm:$0xf]
    %v230 = vld [vmem:[%s5 + $0xc] sm:$0xf]
    %v231 = vld [vmem:[%s5 + $0x10] sm:$0xf]
    %v232 = vld [vmem:[%s5 + $0x14] sm:$0xf]
    %v233 = vld [vmem:[%s5 + $0x18] sm:$0xf]
    %v234 = vld [vmem:[%s5 + $0x1c] sm:$0xf]
    %v235 = vld [vmem:[%s5 + $0x20] sm:$0xf]
    %v236 = vld [vmem:[%s5 + $0x24] sm:$0xf]
    %v237 = vld [vmem:[%s5 + $0x28] sm:$0xf]
    %v238 = vld [vmem:[%s5 + $0x2c] sm:$0xf]
    %v239 = vld [vmem:[%s5 + $0x30] sm:$0xf]
    %v240 = vld [vmem:[%s5 + $0x34] sm:$0xf]
    %v241 = vld [vmem:[%s5 + $0x38] sm:$0xf]
    %v242 = vld [vmem:[%s5 + $0x3c] sm:$0xf]
    %v243 = vld [vmem:[%s6] sm:$0x1]
    %v245 = vlaneseq
    %v246 = vshrl.u32 %v245, 7
    %v247 = vsub.s32 0, %v246
    %v248 = vrot.slane %v243, %v247
    %v266 = vunpack.c.l.b16 %v227
    %v267 = vunpack.c.l.b16 %v228
    %v268 = vunpack.c.l.b16 %v229
    %v269 = vunpack.c.l.b16 %v230
    %v270 = vunpack.c.l.b16 %v231
    %v271 = vunpack.c.l.b16 %v232
    %v272 = vunpack.c.l.b16 %v233
    %v273 = vunpack.c.l.b16 %v234
    %v274 = vunpack.c.l.b16 %v235
    %v275 = vunpack.c.l.b16 %v236
    %v276 = vunpack.c.l.b16 %v237
    %v277 = vunpack.c.l.b16 %v238
    %v278 = vunpack.c.l.b16 %v239
    %v279 = vunpack.c.l.b16 %v240
    %v280 = vunpack.c.l.b16 %v241
    %v281 = vunpack.c.l.b16 %v242
    %v282 = vpack.c.b16 %v267, %v266
    %v283 = vpack.c.b16 %v269, %v268
    %v284 = vpack.c.b16 %v271, %v270
    %v285 = vpack.c.b16 %v273, %v272
    %v286 = vpack.c.b16 %v275, %v274
    %v287 = vpack.c.b16 %v277, %v276
    %v288 = vpack.c.b16 %v279, %v278
    %v289 = vpack.c.b16 %v281, %v280
    %298 = vmatprep.subr.bf16.mxu0 0
    %299 = vmatpush1.bf16.msra.mxu0 %v289
    %300 = vmatprep.subr.bf16.mxu0 0
    %301 = vmatpush1.bf16.msra.mxu0 %v288
    %302 = vmatprep.subr.bf16.mxu0 0
    %303 = vmatpush1.bf16.msra.mxu0 %v287
    %304 = vmatprep.subr.bf16.mxu0 0
    %305 = vmatpush1.bf16.msra.mxu0 %v286
    %306 = vmatprep.subr.bf16.mxu0 0
    %307 = vmatpush1.bf16.msra.mxu0 %v285
    %308 = vmatprep.subr.bf16.mxu0 0
    %309 = vmatpush1.bf16.msra.mxu0 %v284
    %310 = vmatprep.subr.bf16.mxu0 0
    %311 = vmatpush1.bf16.msra.mxu0 %v283
    %312 = vmatprep.subr.bf16.mxu0 0
    %313 = vmatpush1.bf16.msra.mxu0 %v282
    %314 = vmatprep.subr.bf16.mxu0 0
    %315 = vmatpush2.bf16.msra.mxu0 0
    %316 = vmatprep.subr.bf16.mxu0 0
    %317 = vmatpush2.bf16.msra.mxu0 0
    %318 = vmatprep.subr.bf16.mxu0 0
    %319 = vmatpush2.bf16.msra.mxu0 0
    %320 = vmatprep.subr.bf16.mxu0 0
    %321 = vmatpush2.bf16.msra.mxu0 0
    %322 = vmatprep.subr.bf16.mxu0 0
    %323 = vmatpush2.bf16.msra.mxu0 0
    %324 = vmatprep.subr.bf16.mxu0 0
    %325 = vmatpush2.bf16.msra.mxu0 0
    %326 = vmatprep.subr.bf16.mxu0 0
    %327 = vmatpush2.bf16.msra.mxu0 0
    %328 = vmatprep.subr.bf16.mxu0 0
    %329 = vmatpush2.bf16.msra.mxu0 0
    %330 = vmatprep.mubr.bf16.mxu0 0
    %331 = vmatmul.mubr.bf16.gmra.mxu0 %v226
    %v332 = vpop.f32.mrf.mxu0
    %v333 = vadd.f32 %v248, %v332
    %v334 = vpop.f32.mrf.mxu0
    %v335 = vpop.f32.mrf.mxu0
    %v336 = vpop.f32.mrf.mxu0
    %337 = vdwg.mxu0
    %vm338 = vcmask 64512
    %v339 = vsel %vm338, %v333, -inf
    %340 = vmax.xlane.f32.xlu0 %v339
    %v341 = vpop.xlane.xlu0 %340
    %v342 = vsub.f32 %v333, %v341
    %v343 = vmul.f32 %v342, 1.442695
    %v344 = vpow.pop %v343
    %v345 = vsel %vm338, %v344, 0.0
    %346 = vadd.xlane.f32.xlu0 %v345
    %v347 = vpop.xlane.xlu0 %346
    %v348 = vrcp.pop %v347
    %v349 = vmul.f32 %v344, %v348
    %350 = vst.msk [vmem:[#allocation7] sm:$0xff] %vm338, %v349
    // Predicated region
    $region38: #{tpu_custom_call.1} parent=1 // pred_check
      _
    $region39: #{tpu_custom_call.1} parent=1 // pred_check_branch
      %352 = sbr.rel (0) target = $region41
    $region40: #{tpu_custom_call.1} parent=1 // pred_region
      %s354 = ssub.s32 128, 128
      %355 = vsyncadd [#allocation4], %s354
      %s357 = sshll.u32 [#allocation7], 4
      %s358 = int_to_ptr.vmem [resolvable:$true] %s357
      %360 = dma.vmem_to_hbm [thread:$0]  %s358, 128, %s7, [#allocation4]
    $region41: #{tpu_custom_call.1} parent=1 // pred_fallthru
      _
    // Predicated region
    $region42: #{tpu_custom_call.1} parent=1 // pred_check
      _
    $region43: #{tpu_custom_call.1} parent=1 // pred_check_branch
      %362 = sbr.rel (0) target = $region45
    $region44: #{tpu_custom_call.1} parent=1 // pred_region
      %363 = dma.done [#allocation4], 128
    $region45: #{tpu_custom_call.1} parent=1 // pred_fallthru
      _
    %364 = vsyncpa [#allocation3], 1
    %365 = vsyncpa [#allocation6], 1
    %366 = vsyncpa [#allocation4], 1

</llo_original>
